<compile_context>
chip_gen: v7x
topology: tpu7x:2x2x1
jax: 0.10.0
libtpu: 0.0.40
codegen_flags: <defaults>
</compile_context>

<pallas_src>
import functools

import jax
import jax.numpy as jnp
from jax.experimental import pallas as pl
from jax.experimental.pallas import tpu as pltpu

# ----------------------------- config (module __init__ args) ----------------
NUM_CLASSES = 4
ODM_VARIANCE = (0.1, 0.2)
TOP_K_PER_CLASS = 8
TOP_K = 16                      # keep_top_k (unused by the reference forward)
DETECT_CONF_THRESH = 0.01
NMS_THRESH = 0.45

TILE_A = 32768                  # anchors per grid step (multiple of 128)


def _round_up(x, m):
  return ((x + m - 1) // m) * m


# ----------------------------- Pallas kernel --------------------------------
def _detect_kernel(packed_ref, boxes_ref, scores_ref, *,
                   num_classes, v0, v1, conf_thresh):
  """Fused softmax + SSD decode + ignore/threshold masking for one tile.

  packed_ref : (1, 9+C, T) rows = [loc(4) | anchors cx,cy,w,h (4) | conf(C) | ignore(1)]
  boxes_ref  : (1, 4,   T) decoded boxes (xmin, ymin, xmax, ymax), f32
  scores_ref : (1, C-1, T) softmax scores for foreground classes 1..C-1,
               zeroed for ignored / low-confidence anchors, f32
  """
  x = packed_ref[0].astype(jnp.float32)            # (P, T), single load + cast
  loc = x[0:4, :]                                  # (4, T)
  pri = x[4:8, :]                                  # (4, T)
  conf = x[8:8 + num_classes, :]                   # (C, T)
  ign = x[8 + num_classes:9 + num_classes, :]      # (1, T)

  # softmax over the class (sublane) axis — matches F.softmax(..., dim=-1).
  m = jnp.max(conf, axis=0, keepdims=True)         # (1, T)
  e = jnp.exp(conf - m)                            # (C, T)  (EUP)
  denom = jnp.sum(e, axis=0, keepdims=True)        # (1, T)
  probs = e[1:, :] / denom                         # (C-1, T) exact divide; skip bg

  # SSD decode: priors in center-size form, loc deltas scaled by variances.
  cxcy = pri[0:2, :] + loc[0:2, :] * v0 * pri[2:4, :]     # (2, T)
  wh = pri[2:4, :] * jnp.exp(loc[2:4, :] * v1)            # (2, T)
  mins = cxcy - 0.5 * wh
  maxs = mins + wh
  # One unmasked full store instead of two sublane-partial stores.
  boxes_ref[0] = jnp.concatenate([mins, maxs], axis=0).astype(boxes_ref.dtype)

  # Mask: keep anchors with ignore flag < 1 and score above the threshold.
  # NOTE: boxes for ignored anchors are still emitted; downstream NMS gates on
  # score > conf_thresh, so they never survive.
  keep = ign < 1.0                                         # (1, T) -> broadcasts
  scores = jnp.where(keep & (probs > conf_thresh), probs, 0.0)
  scores_ref[0] = scores.astype(scores_ref.dtype)


def _choose_tile_a(A, B, tile_a):
  """Anchor-tile size: multiple of 128, or the full anchor extent."""
  if A % 128 != 0:
    # Full-extent block (allowed) when small; otherwise ragged last tile.
    return A if A < tile_a else tile_a
  ta = min(tile_a, A)
  if B == 1 and ta == A and A >= 256:
    # Keep >= 2 parallel grid steps so both v7x TensorCores are used.
    ta = _round_up(A // 2, 128)
  return ta


def detect_decode_pallas(loc, conf, anchors, ignore,
                         variance=ODM_VARIANCE,
                         conf_thresh=DETECT_CONF_THRESH,
                         tile_a=TILE_A):
  """Returns boxes (B, 4, A) f32 and masked foreground scores (B, C-1, A) f32."""
  B, A, C = conf.shape
  P = 4 + 4 + C + 1

  # Keep the original (possibly bf16/f16) dtype for the DMA; cast in-kernel.
  pack_dtype = jnp.result_type(loc.dtype, conf.dtype, anchors.dtype)

  # Single packed anchor-last operand (one fused transpose/concat pass).
  # TODO(synk): if the producing ODM heads emit anchor-last (B, rows, A)
  # directly, this layout pass disappears entirely.
  loc_t = jnp.transpose(loc, (0, 2, 1)).astype(pack_dtype)        # (B, 4, A)
  pri_t = jnp.transpose(anchors, (0, 2, 1)).astype(pack_dtype)    # (B, 4, A)
  conf_t = jnp.transpose(conf, (0, 2, 1)).astype(pack_dtype)      # (B, C, A)
  ign_t = ignore.reshape(B, 1, A).astype(pack_dtype)              # (B, 1, A)
  packed = jnp.concatenate([loc_t, pri_t, conf_t, ign_t], axis=1)  # (B, P, A)

  ta = _choose_tile_a(A, B, tile_a)
  n_tiles = pl.cdiv(A, ta)

  # VMEM budget from the actual double-buffered tile footprint (+2x headroom),
  # capped for v7x's 64 MiB physical VMEM.
  elt = jnp.dtype(pack_dtype).itemsize
  tile_bytes = (_round_up(P, 8) * ta * elt            # packed input tile
                + _round_up(4, 8) * ta * 4            # boxes out tile
                + _round_up(C - 1, 8) * ta * 4)       # scores out tile
  vmem_limit = int(min(max(4 * tile_bytes, 16 << 20), 48 << 20))

  kernel = functools.partial(_detect_kernel, num_classes=C,
                             v0=float(variance[0]), v1=float(variance[1]),
                             conf_thresh=float(conf_thresh))

  boxes_t, scores_t = pl.pallas_call(
      kernel,
      out_shape=(jax.ShapeDtypeStruct((B, 4, A), jnp.float32),
                 jax.ShapeDtypeStruct((B, C - 1, A), jnp.float32)),
      grid=(B, n_tiles),
      in_specs=[pl.BlockSpec((1, P, ta), lambda b, t: (b, 0, t))],
      out_specs=(pl.BlockSpec((1, 4, ta), lambda b, t: (b, 0, t)),
                 pl.BlockSpec((1, C - 1, ta), lambda b, t: (b, 0, t))),
      compiler_params=pltpu.CompilerParams(
          dimension_semantics=("parallel", "parallel"),
          vmem_limit_bytes=vmem_limit),
  )(packed)

  return boxes_t, scores_t


# ----------------------------- plain-JAX glue (NMS / assembly) ---------------
def _iou_matrix(boxes):
  """boxes: (4, k) in (x1, y1, x2, y2) layout -> (k, k) IoU (NaN-free)."""
  x1, y1, x2, y2 = boxes[0], boxes[1], boxes[2], boxes[3]
  area = jnp.clip(x2 - x1, 0.0) * jnp.clip(y2 - y1, 0.0)
  xx1 = jnp.maximum(x1[:, None], x1[None, :])
  yy1 = jnp.maximum(y1[:, None], y1[None, :])
  xx2 = jnp.minimum(x2[:, None], x2[None, :])
  yy2 = jnp.minimum(y2[:, None], y2[None, :])
  inter = jnp.clip(xx2 - xx1, 0.0) * jnp.clip(yy2 - yy1, 0.0)
  union = area[:, None] + area[None, :] - inter
  return inter / jnp.maximum(union, 1e-12)


def _per_class_nms(boxes_4a, scores_c, nms_thresh, conf_thresh, k):
  """Fixed-size greedy NMS for one class.  boxes_4a (4, A), scores_c (A,)."""
  top_sc, top_idx = jax.lax.top_k(scores_c, k)        # score-descending
  top_boxes = boxes_4a[:, top_idx]                    # (4, k)
  iou = _iou_matrix(top_boxes)

  def body(i, keep):
    earlier = (jnp.arange(k) < i) & keep
    suppressed = jnp.any((iou[i] > nms_thresh) & earlier)
    return keep.at[i].set((top_sc[i] > conf_thresh) & jnp.logical_not(suppressed))

  keep = jax.lax.fori_loop(0, k, body, jnp.zeros((k,), dtype=bool))
  # pack surviving detections at the front (stable, keeps score-desc order)
  order = jnp.argsort(jnp.logical_not(keep).astype(jnp.int32))
  keep_o = keep[order]
  out_scores = jnp.where(keep_o, top_sc[order], 0.0)                 # (k,)
  out_boxes = jnp.where(keep_o[None, :], top_boxes[:, order], 0.0)   # (4, k)
  return jnp.concatenate([out_scores[:, None], out_boxes.T], axis=1)  # (k, 5)


def detect_forward(odm_loc, odm_conf, refined_anchors, ignore_flags):
  """Equivalent of Detect.forward -> (B, num_classes, top_k_per_class, 5)."""
  boxes, fg_scores = detect_decode_pallas(odm_loc, odm_conf, refined_anchors,
                                          ignore_flags)
  # boxes: (B, 4, A), fg_scores: (B, C-1, A) — lane-dense, background dropped.

  def per_image(boxes_i, scores_i):
    def per_class(c_scores):
      return _per_class_nms(boxes_i, c_scores, NMS_THRESH,
                            DETECT_CONF_THRESH, TOP_K_PER_CLASS)
    cls_out = jax.vmap(per_class)(scores_i)                     # (C-1, k, 5)
    bg = jnp.zeros((1, TOP_K_PER_CLASS, 5), dtype=cls_out.dtype)
    return jnp.concatenate([bg, cls_out], axis=0)               # (C, k, 5)

  output = jax.vmap(per_image)(boxes, fg_scores)                # (B, C, k, 5)

  # TODO(synk): second-stage cross-class re-NMS / per-class re-grouping
  # ("output2" path, which also indexes output[0] regardless of idx — a bug in
  # the reference) is data-dependent bookkeeping with no clean fixed-shape
  # Pallas/JAX equivalent; returning the per-class NMS output instead.
  return output


# ----------------------------- demo ------------------------------------------
if __name__ == "__main__":
  B, A, C = 2, 128, NUM_CLASSES
  key = jax.random.PRNGKey(0)
  k1, k2, k3, k4, k5 = jax.random.split(key, 5)

  odm_loc = 0.1 * jax.random.normal(k1, (B, A, 4), dtype=jnp.float32)
  odm_conf = jax.random.normal(k2, (B, A, C), dtype=jnp.float32)
  cxcy = jax.random.uniform(k3, (B, A, 2), minval=0.2, maxval=0.8,
                            dtype=jnp.float32)
  wh = jax.random.uniform(k4, (B, A, 2), minval=0.05, maxval=0.3,
                          dtype=jnp.float32)
  refined_anchors = jnp.concatenate([cxcy, wh], axis=-1)        # (B, A, 4)
  ignore_flags = (jax.random.uniform(k5, (B, A)) < 0.3).astype(jnp.float32)

  out = jax.jit(detect_forward)(odm_loc, odm_conf, refined_anchors,
                                ignore_flags)
  jax.block_until_ready(out)
  assert out.shape == (B, NUM_CLASSES, TOP_K_PER_CLASS, 5)
  assert bool(jnp.all(jnp.isfinite(out)))
  print("KERNEL_OK")
</pallas_src>

<mosaic_0001>
module attributes {stable_mosaic.version = 11 : i64} {
  func.func @_detect_kernel(%arg0: i32, %arg1: i32, %arg2: memref<1x13x128xf32, #tpu.memory_space<vmem>>, %arg3: memref<1x4x128xf32, #tpu.memory_space<vmem>>, %arg4: memref<1x3x128xf32, #tpu.memory_space<vmem>>) attributes {dimension_semantics = [#tpu.dimension_semantics<parallel>, #tpu.dimension_semantics<parallel>], iteration_bounds = array<i64: 2, 1>, scalar_prefetch = 0 : i64, scratch_operands = 0 : i64, tpu.core_type = #tpu.core_type<tc>, window_params = [{transform_indices = @transform_0, window_bounds = array<i64: 1, 13, 128>}, {transform_indices = @transform_1, window_bounds = array<i64: 1, 4, 128>}, {transform_indices = @transform_2, window_bounds = array<i64: 1, 3, 128>}]} {
    %c0 = arith.constant 0 : index
    %c0_0 = arith.constant 0 : index
    %c0_1 = arith.constant 0 : index
    %0 = vector.load %arg2[%c0, %c0_0, %c0_1] : memref<1x13x128xf32, #tpu.memory_space<vmem>>, vector<1x13x128xf32>
    %1 = vector.shape_cast %0 : vector<1x13x128xf32> to vector<13x128xf32>
    %2 = vector.extract_strided_slice %1 {offsets = [0, 0], sizes = [4, 128], strides = [1, 1]} : vector<13x128xf32> to vector<4x128xf32>
    %3 = vector.extract_strided_slice %1 {offsets = [4, 0], sizes = [4, 128], strides = [1, 1]} : vector<13x128xf32> to vector<4x128xf32>
    %4 = vector.extract_strided_slice %1 {offsets = [8, 0], sizes = [4, 128], strides = [1, 1]} : vector<13x128xf32> to vector<4x128xf32>
    %5 = vector.extract_strided_slice %1 {offsets = [12, 0], sizes = [1, 128], strides = [1, 1]} : vector<13x128xf32> to vector<1x128xf32>
    %cst = arith.constant dense<0xFF800000> : vector<128xf32>
    %6 = vector.multi_reduction <maximumf>, %4, %cst [0] : vector<4x128xf32> to vector<128xf32>
    %7 = vector.shape_cast %6 : vector<128xf32> to vector<1x128xf32>
    %8 = vector.broadcast %7 : vector<1x128xf32> to vector<4x128xf32>
    %9 = arith.subf %4, %8 : vector<4x128xf32>
    %10 = math.exp %9 : vector<4x128xf32>
    %cst_2 = arith.constant dense<0.000000e+00> : vector<128xf32>
    %11 = vector.multi_reduction <add>, %10, %cst_2 [0] : vector<4x128xf32> to vector<128xf32>
    %12 = vector.shape_cast %11 : vector<128xf32> to vector<1x128xf32>
    %13 = vector.extract_strided_slice %10 {offsets = [1, 0], sizes = [3, 128], strides = [1, 1]} : vector<4x128xf32> to vector<3x128xf32>
    %14 = vector.broadcast %12 : vector<1x128xf32> to vector<3x128xf32>
    %15 = arith.divf %13, %14 : vector<3x128xf32>
    %16 = vector.extract_strided_slice %3 {offsets = [0, 0], sizes = [2, 128], strides = [1, 1]} : vector<4x128xf32> to vector<2x128xf32>
    %17 = vector.extract_strided_slice %2 {offsets = [0, 0], sizes = [2, 128], strides = [1, 1]} : vector<4x128xf32> to vector<2x128xf32>
    %cst_3 = arith.constant 1.000000e-01 : f32
    %18 = vector.broadcast %cst_3 : f32 to vector<2x128xf32>
    %19 = arith.mulf %17, %18 : vector<2x128xf32>
    %20 = vector.extract_strided_slice %3 {offsets = [2, 0], sizes = [2, 128], strides = [1, 1]} : vector<4x128xf32> to vector<2x128xf32>
    %21 = arith.mulf %19, %20 : vector<2x128xf32>
    %22 = arith.addf %16, %21 : vector<2x128xf32>
    %23 = vector.extract_strided_slice %3 {offsets = [2, 0], sizes = [2, 128], strides = [1, 1]} : vector<4x128xf32> to vector<2x128xf32>
    %24 = vector.extract_strided_slice %2 {offsets = [2, 0], sizes = [2, 128], strides = [1, 1]} : vector<4x128xf32> to vector<2x128xf32>
    %cst_4 = arith.constant 2.000000e-01 : f32
    %25 = vector.broadcast %cst_4 : f32 to vector<2x128xf32>
    %26 = arith.mulf %24, %25 : vector<2x128xf32>
    %27 = math.exp %26 : vector<2x128xf32>
    %28 = arith.mulf %23, %27 : vector<2x128xf32>
    %cst_5 = arith.constant 5.000000e-01 : f32
    %29 = vector.broadcast %cst_5 : f32 to vector<2x128xf32>
    %30 = arith.mulf %29, %28 : vector<2x128xf32>
    %31 = arith.subf %22, %30 : vector<2x128xf32>
    %32 = arith.addf %31, %28 : vector<2x128xf32>
    %33 = tpu.concatenate %31, %32 in 0 : vector<2x128xf32>, vector<2x128xf32> -> vector<4x128xf32>
    %c0_6 = arith.constant 0 : index
    %c0_7 = arith.constant 0 : index
    %c0_8 = arith.constant 0 : index
    %34 = vector.load %arg3[%c0_6, %c0_7, %c0_8] : memref<1x4x128xf32, #tpu.memory_space<vmem>>, vector<1x4x128xf32>
    %35 = vector.shape_cast %34 : vector<1x4x128xf32> to vector<4x128xf32>
    %36 = vector.shape_cast %33 : vector<4x128xf32> to vector<1x4x128xf32>
    tpu.vector_store %arg3[%c0_6, %c0_7, %c0_8], %36 {strides = array<i32>} : memref<1x4x128xf32, #tpu.memory_space<vmem>>, vector<1x4x128xf32>,
    %cst_9 = arith.constant 1.000000e+00 : f32
    %37 = vector.broadcast %cst_9 : f32 to vector<1x128xf32>
    %38 = arith.cmpf olt, %5, %37 : vector<1x128xf32>
    %cst_10 = arith.constant 0.00999999977 : f32
    %39 = vector.broadcast %cst_10 : f32 to vector<3x128xf32>
    %40 = arith.cmpf ogt, %15, %39 : vector<3x128xf32>
    %41 = vector.broadcast %38 : vector<1x128xi1> to vector<3x128xi1>
    %42 = arith.andi %41, %40 : vector<3x128xi1>
    %cst_11 = arith.constant 0.000000e+00 : f32
    %43 = vector.broadcast %cst_11 : f32 to vector<3x128xf32>
    %44 = arith.select %42, %15, %43 : vector<3x128xi1>, vector<3x128xf32>
    %c0_12 = arith.constant 0 : index
    %c0_13 = arith.constant 0 : index
    %c0_14 = arith.constant 0 : index
    %45 = vector.load %arg4[%c0_12, %c0_13, %c0_14] : memref<1x3x128xf32, #tpu.memory_space<vmem>>, vector<1x3x128xf32>
    %46 = vector.shape_cast %45 : vector<1x3x128xf32> to vector<3x128xf32>
    %47 = vector.shape_cast %44 : vector<3x128xf32> to vector<1x3x128xf32>
    tpu.vector_store %arg4[%c0_12, %c0_13, %c0_14], %47 {strides = array<i32>} : memref<1x3x128xf32, #tpu.memory_space<vmem>>, vector<1x3x128xf32>,
    return
  }
  func.func @transform_0(%arg0: i32, %arg1: i32) -> (i32, i32, i32) {
    %c0_i32 = arith.constant 0 : i32
    %c0_i32_0 = arith.constant 0 : i32
    return %arg0, %c0_i32, %arg1 : i32, i32, i32
  }
  func.func @transform_1(%arg0: i32, %arg1: i32) -> (i32, i32, i32) {
    %c0_i32 = arith.constant 0 : i32
    %c0_i32_0 = arith.constant 0 : i32
    return %arg0, %c0_i32, %arg1 : i32, i32, i32
  }
  func.func @transform_2(%arg0: i32, %arg1: i32) -> (i32, i32, i32) {
    %c0_i32 = arith.constant 0 : i32
    %c0_i32_0 = arith.constant 0 : i32
    return %arg0, %c0_i32, %arg1 : i32, i32, i32
  }
}

</mosaic_0001>

<llo_original>
// kernel: detect_forward.1
$region0: #{detect_forward.1}
  #allocation0 [shape = 'u32[]', space=smem, size = 0x4, offset = 0x4, fixed_abs, tag = 'smem constant byte address 0x4 - core index']
  #allocation1 [shape = 'u32[144,128]{1,0:T(1,128)}', space=vmem, size = 0x12000, scoped, tag = 'internal scratch']
  %s0 = inlined_call_operand.vmem [shape: f32[2,13,128], index: 0, kind: input, shape index: {}]
  %s1 = inlined_call_operand.vmem [shape: f32[2,4,128], index: 1, kind: output, shape index: {0}]
  %s2 = inlined_call_operand.vmem [shape: f32[2,3,128], index: 2, kind: output, shape index: {1}]
  %3 = xla_tuple %s1, %s2
  %s4 = sld [smem:[#allocation0]]
  $region45: #{detect_forward.1} parent=0
    _
  %s6 = ssub.s32 1, %s4
  %s7 = scalar_select 0, %s6, %s4
  loop: start=0, step=1, limit=4
  $region2: #{detect_forward.1} parent=0 // loop_pre_header
    _
  $region3: #{detect_forward.1} parent=0 // loop_header
    %s9 = sphi 0, %s13
    %p10 = scmp.ge.s32.totalorder %s9, 4
    %s16 = sphi 0, %s28
    %s17 = sphi 0, %s24
    %s18 = sphi 0, %s16
    %s19 = sphi 0, %s17
    %s20 = sphi 0, %s18
    %s21 = sphi 0, %s19
    %s33 = sphi 0, %s35
    %s36 = sphi 0, %s33
    %s37 = sphi 0, %s36
    %s53 = sphi 0, %s37
    %s61 = sphi 0, %s63
    %s64 = sphi 0, %s61
    %s65 = sphi 0, %s64
    %s81 = sphi 0, %s65
    %s89 = sphi 0, %s91
    %s92 = sphi 0, %s89
    %s93 = sphi 0, %s92
    %s109 = sphi 0, %s93
  $region4: #{detect_forward.1} parent=0 // loop_header_branch
    %12 = sbr.rel (%p10) target = $region8
  $region5: #{detect_forward.1} parent=0 // loop_body
    %s14 = ssub.s32 %s9, 1
    %s15 = ssub.s32 %s9, 2
    %s22 = sadd.s32 1, %s17
    %p23 = scmp.ge.s32.totalorder %s22, 1
    %s24 = scalar_select %p23, 0, %s22
    %s25 = sadd.s32 1, %s16
    %s26 = scalar_select %p23, %s25, %s16
    %p27 = scmp.ge.s32.totalorder %s26, 2
    %s28 = scalar_select %p27, 0, %s26
    %s29 = ssub.s32 %s16, %s28
    %s30 = ssub.s32 %s17, %s24
    %s31 = sor.u32 %s29, %s30
    %p32 = scmp.eq.s32.totalorder %s31, 0
    %s34 = sadd.s32 %s33, 1
    %s35 = scalar_select %p32, %s33, %s34
    %p38 = pneg %p32
    %p39 = scmp.eq.s32.totalorder %s9, 1
    %p40 = por %p38, %p39
    %p41 = scmp.ne.s32.totalorder %s33, %s36
    %p42 = scmp.eq.s32.totalorder %s9, 0
    %p43 = por %p41, %p42
    %p44 = scmp.ne.s32.totalorder %s33, %s36
    %p45 = scmp.eq.s32.totalorder %s14, 1
    %p46 = por %p44, %p45
    %p47 = scmp.ne.s32.totalorder %s36, %s37
    %p48 = scmp.eq.s32.totalorder %s14, 0
    %p49 = por %p47, %p48
    %p50 = scmp.ne.s32.totalorder %s36, %s37
    %p51 = scmp.eq.s32.totalorder %s15, 1
    %p52 = por %p50, %p51
    %p54 = scmp.ne.s32.totalorder %s37, %s53
    %p55 = scmp.eq.s32.totalorder %s15, 0
    %p56 = por %p54, %p55
    %s57 = ssub.s32 %s16, %s28
    %s58 = ssub.s32 %s17, %s24
    %s59 = sor.u32 %s57, %s58
    %p60 = scmp.eq.s32.totalorder %s59, 0
    %s62 = sadd.s32 %s61, 1
    %s63 = scalar_select %p60, %s61, %s62
    %p66 = pneg %p60
    %p67 = scmp.eq.s32.totalorder %s9, 1
    %p68 = por %p66, %p67
    %p69 = scmp.ne.s32.totalorder %s61, %s64
    %p70 = scmp.eq.s32.totalorder %s9, 0
    %p71 = por %p69, %p70
    %p72 = scmp.ne.s32.totalorder %s61, %s64
    %p73 = scmp.eq.s32.totalorder %s14, 1
    %p74 = por %p72, %p73
    %p75 = scmp.ne.s32.totalorder %s64, %s65
    %p76 = scmp.eq.s32.totalorder %s14, 0
    %p77 = por %p75, %p76
    %p78 = scmp.ne.s32.totalorder %s64, %s65
    %p79 = scmp.eq.s32.totalorder %s15, 1
    %p80 = por %p78, %p79
    %p82 = scmp.ne.s32.totalorder %s65, %s81
    %p83 = scmp.eq.s32.totalorder %s15, 0
    %p84 = por %p82, %p83
    %s85 = ssub.s32 %s16, %s28
    %s86 = ssub.s32 %s17, %s24
    %s87 = sor.u32 %s85, %s86
    %p88 = scmp.eq.s32.totalorder %s87, 0
    %s90 = sadd.s32 %s89, 1
    %s91 = scalar_select %p88, %s89, %s90
    %p94 = pneg %p88
    %p95 = scmp.eq.s32.totalorder %s9, 1
    %p96 = por %p94, %p95
    %p97 = scmp.ne.s32.totalorder %s89, %s92
    %p98 = scmp.eq.s32.totalorder %s9, 0
    %p99 = por %p97, %p98
    %p100 = scmp.ne.s32.totalorder %s89, %s92
    %p101 = scmp.eq.s32.totalorder %s14, 1
    %p102 = por %p100, %p101
    %p103 = scmp.ne.s32.totalorder %s92, %s93
    %p104 = scmp.eq.s32.totalorder %s14, 0
    %p105 = por %p103, %p104
    %p106 = scmp.ne.s32.totalorder %s92, %s93
    %p107 = scmp.eq.s32.totalorder %s15, 1
    %p108 = por %p106, %p107
    %p110 = scmp.ne.s32.totalorder %s93, %s109
    %p111 = scmp.eq.s32.totalorder %s15, 0
    %p112 = por %p110, %p111
    %p113 = scmp.le.s32.totalorder 1, %s9
    %p114 = scmp.lt.s32.totalorder %s9, 3
    %p115 = pnand %p113, %p114
    %p116 = pneg %p115
    // Predicated region
    $region9: #{detect_forward.1} parent=5 // pred_check
      _
    $region10: #{detect_forward.1} parent=5 // pred_check_branch
      %118 = sbr.rel (%p115) target = $region12
    $region11: #{detect_forward.1} parent=5 // pred_region
      %s119 = ssub.s32 %s9, 1
    $region12: #{detect_forward.1} parent=5 // pred_fallthru
      _
    %p120 = scmp.lt.s32.totalorder %s9, 2
    // Predicated region
    $region13: #{detect_forward.1} parent=5 // pred_check
      %p121 = pneg %p120
    $region14: #{detect_forward.1} parent=5 // pred_check_branch
      %123 = sbr.rel (%p121) target = $region16
    $region15: #{detect_forward.1} parent=5 // pred_region
      // Predicated region
      $region17: #{detect_forward.1} parent=15 // pred_check
        %p124 = pneg %p43
      $region18: #{detect_forward.1} parent=15 // pred_check_branch
        %126 = sbr.rel (%p124) target = $region20
      $region19: #{detect_forward.1} parent=15 // pred_region
        %p127 = scmp.lt.s32.totalorder %s16, 1
        %s128 = scalar_select %p127, %s16, 1
        %p129 = scmp.lt.s32.totalorder %s17, 0
        %s130 = scalar_select %p129, %s17, 0
        %s131 = smul.addr %s128, 2
        %s132 = sadd.s32 %s130, %s131
        %s133 = smul.addr %s132, 8
        %s134 = scalar_lea.vmem %s0, %s133
      $region20: #{detect_forward.1} parent=15 // pred_fallthru
        _
    $region16: #{detect_forward.1} parent=5 // pred_fallthru
      _
    %p135 = scmp.le.s32.totalorder 1, %s9
    %p136 = scmp.lt.s32.totalorder %s9, 3
    %p137 = pnand %p135, %p136
    %p138 = pneg %p137
    // Predicated region
    $region21: #{detect_forward.1} parent=5 // pred_check
      _
    $region22: #{detect_forward.1} parent=5 // pred_check_branch
      %140 = sbr.rel (%p137) target = $region24
    $region23: #{detect_forward.1} parent=5 // pred_region
      %s141 = ssub.s32 %s9, 1
      %p142 = scmp.lt.s32.totalorder %s18, 1
      %s143 = scalar_select %p142, %s18, 1
      %p144 = scmp.lt.s32.totalorder %s19, 0
      %s145 = scalar_select %p144, %s19, 0
      %s146 = smul.addr %s143, 2
      %s147 = sadd.s32 %s145, %s146
      %s148 = smul.addr %s147, 8
      %s149 = scalar_lea.vmem %s0, %s148
      %p150 = pneg %p49
      %p151 = pneg %p46
      %p152 = pneg %p77
      %p153 = pneg %p74
      %p154 = scmp.lt.s32.totalorder %s18, 1
      %s155 = scalar_select %p154, %s18, 1
      %p156 = scmp.lt.s32.totalorder %s19, 0
      %s157 = scalar_select %p156, %s19, 0
      %s158 = sadd.s32 %s157, %s155
      %s159 = smul.addr %s158, 4
      %s160 = scalar_lea.vmem %s1, %s159
      %p161 = pneg %p105
      %p162 = pneg %p102
      %p163 = scmp.lt.s32.totalorder %s18, 1
      %s164 = scalar_select %p163, %s18, 1
      %p165 = scmp.lt.s32.totalorder %s19, 0
      %s166 = scalar_select %p165, %s19, 0
      %s167 = sadd.s32 %s166, %s164
      %s168 = smul.addr %s167, 4
      %s169 = scalar_lea.vmem %s2, %s168
      %p170 = scmp.lt.s32.totalorder %s18, 1
      %s171 = scalar_select %p170, %s18, 1
      %p172 = scmp.lt.s32.totalorder %s19, 0
      %s173 = scalar_select %p172, %s19, 0
      %s174 = smul.addr %s171, 2
      %s175 = sadd.s32 %s173, %s174
      %s176 = smul.addr %s175, 8
      %s177 = scalar_lea.vmem %s0, %s176
      %p178 = scmp.lt.s32.totalorder %s18, 1
      %s179 = scalar_select %p178, %s18, 1
      %p180 = scmp.lt.s32.totalorder %s19, 0
      %s181 = scalar_select %p180, %s19, 0
      %s182 = sadd.s32 %s181, %s179
      %s183 = smul.addr %s182, 4
      %s184 = scalar_lea.vmem %s1, %s183
      %p185 = scmp.lt.s32.totalorder %s18, 1
      %s186 = scalar_select %p185, %s18, 1
      %p187 = scmp.lt.s32.totalorder %s19, 0
      %s188 = scalar_select %p187, %s19, 0
      %s189 = sadd.s32 %s188, %s186
      %s190 = smul.addr %s189, 4
      %s191 = scalar_lea.vmem %s2, %s190
      %v192 = vld [vmem:[%s177] sm:$0xff]
      %v193 = vld [vmem:[%s177 + $0x8] sm:$0x1f]
      %vm194 = vcmask 1043456
      %v195 = vsel %vm194, %v193, -inf
      %v196 = vrot.slane %v195, 4
      %v197 = vmax.f32 %v195, %v196
      %v198 = vrot.slane %v197, 2
      %v199 = vmax.f32 %v197, %v198
      %v200 = vrot.slane %v199, 1
      %v201 = vmax.f32 %v199, %v200
      %v202 = vsub.f32 %v193, %v201
      %v203 = vmul.f32 %v202, 1.442695
      %v204 = vpow.pop %v203
      %v205 = vsel %vm194, %v204, 0.0
      %v206 = vrot.slane %v205, 4
      %v207 = vadd.f32 %v205, %v206
      %v208 = vrot.slane %v207, 2
      %v209 = vadd.f32 %v207, %v208
      %v210 = vrot.slane %v209, 1
      %v211 = vadd.f32 %v209, %v210
      %v212 = vrcp.pop %v211
      %v213 = vmul.f32 %v204, %v212
      %v214 = vmul.f32 %v192, 0.1
      %v216 = vrot.slane %v192, 6
      %v218 = vmul.f32 %v214, %v216
      %v220 = vrot.slane %v218, 4
      %v222 = vadd.f32 %v192, %v220
      %v223 = vmul.f32 %v192, 0.2
      %v224 = vmul.f32 %v223, 1.442695
      %v225 = vpow.pop %v224
      %v227 = vrot.slane %v225, 4
      %v229 = vmul.f32 %v192, %v227
      %v230 = vmul.f32 %v229, 0.5
      %v232 = vrot.slane %v230, 2
      %v234 = vsub.f32 %v222, %v232
      %v236 = vrot.slane %v229, 2
      %v238 = vadd.f32 %v234, %v236
      %v240 = vrot.slane %v234, 4
      %v243 = vrot.slane %v238, 2
      %vm245 = vcmask 1041408
      %v246 = vsel %vm245, %v240, %v243
      %247 = vst [vmem:[%s184] sm:$0xf] %v246
      %vm248 = vcmp.lt.f32.partialorder %v193, 1.0
      %vm249 = vcmp.gt.f32.partialorder %v213, 0.01
      %v250 = vsel %vm248, 1, 0
      %v251 = vlaneseq
      %v252 = vshrl.u32 %v251, 7
      %v253 = vsub.s32 4, %v252
      %v254 = vrot.slane %v250, %v253
      %vm255 = vcmp.eq.s32.totalorder %v254, 1
      %vm256 = vmand %vm255, %vm249
      %v257 = vsel %vm256, %v213, 0.0
      %258 = vst [vmem:[%s191 - $0x1] sm:$0xe] %v257
      %p259 = scmp.lt.s32.totalorder %s18, 1
      %s260 = scalar_select %p259, %s18, 1
      %p261 = scmp.lt.s32.totalorder %s19, 0
      %s262 = scalar_select %p261, %s19, 0
      %s263 = sadd.s32 %s262, %s260
      %s264 = smul.addr %s263, 4
      %s265 = scalar_lea.vmem %s1, %s264
      %p266 = scmp.lt.s32.totalorder %s18, 1
      %s267 = scalar_select %p266, %s18, 1
      %p268 = scmp.lt.s32.totalorder %s19, 0
      %s269 = scalar_select %p268, %s19, 0
      %s270 = sadd.s32 %s269, %s267
      %s271 = smul.addr %s270, 4
      %s272 = scalar_lea.vmem %s2, %s271
      // Predicated region
      $region25: #{detect_forward.1} parent=23 // pred_check
        %p273 = pneg %p74
      $region26: #{detect_forward.1} parent=23 // pred_check_branch
        %275 = sbr.rel (%p273) target = $region28
      $region27: #{detect_forward.1} parent=23 // pred_region
        _
      $region28: #{detect_forward.1} parent=23 // pred_fallthru
        _
      // Predicated region
      $region29: #{detect_forward.1} parent=23 // pred_check
        %p276 = pneg %p102
      $region30: #{detect_forward.1} parent=23 // pred_check_branch
        %278 = sbr.rel (%p276) target = $region32
      $region31: #{detect_forward.1} parent=23 // pred_region
        _
      $region32: #{detect_forward.1} parent=23 // pred_fallthru
        _
    $region24: #{detect_forward.1} parent=5 // pred_fallthru
      _
    %p279 = scmp.le.s32.totalorder 2, %s9
    // Predicated region
    $region33: #{detect_forward.1} parent=5 // pred_check
      %p280 = pneg %p279
    $region34: #{detect_forward.1} parent=5 // pred_check_branch
      %282 = sbr.rel (%p280) target = $region36
    $region35: #{detect_forward.1} parent=5 // pred_region
      %s283 = ssub.s32 %s9, 2
      // Predicated region
      $region37: #{detect_forward.1} parent=35 // pred_check
        %p284 = pneg %p80
      $region38: #{detect_forward.1} parent=35 // pred_check_branch
        %286 = sbr.rel (%p284) target = $region40
      $region39: #{detect_forward.1} parent=35 // pred_region
        %p287 = scmp.lt.s32.totalorder %s20, 1
        %s288 = scalar_select %p287, %s20, 1
        %p289 = scmp.lt.s32.totalorder %s21, 0
        %s290 = scalar_select %p289, %s21, 0
        %s291 = sadd.s32 %s290, %s288
        %s292 = smul.addr %s291, 4
        %s293 = scalar_lea.vmem %s1, %s292
      $region40: #{detect_forward.1} parent=35 // pred_fallthru
        _
      // Predicated region
      $region41: #{detect_forward.1} parent=35 // pred_check
        %p294 = pneg %p108
      $region42: #{detect_forward.1} parent=35 // pred_check_branch
        %296 = sbr.rel (%p294) target = $region44
      $region43: #{detect_forward.1} parent=35 // pred_region
        %p297 = scmp.lt.s32.totalorder %s20, 1
        %s298 = scalar_select %p297, %s20, 1
        %p299 = scmp.lt.s32.totalorder %s21, 0
        %s300 = scalar_select %p299, %s21, 0
        %s301 = sadd.s32 %s300, %s298
        %s302 = smul.addr %s301, 4
        %s303 = scalar_lea.vmem %s2, %s302
      $region44: #{detect_forward.1} parent=35 // pred_fallthru
        _
    $region36: #{detect_forward.1} parent=5 // pred_fallthru
      _
  $region6: #{detect_forward.1} parent=0 // loop_footer
    %s13 = sadd.s32 1, %s9
  $region7: #{detect_forward.1} parent=0 // loop_footer_branch
    %8 = sbr.rel target = $region3
  $region8: #{detect_forward.1} parent=0 // loop_exit
    _

</llo_original>
